<compile_context>
chip_gen: v5e
topology: v5e:2x2
jax: 0.10.0
libtpu: 0.0.40
codegen_flags: <defaults>
</compile_context>

<pallas_src>
import functools
from typing import NamedTuple

import jax
import jax.numpy as jnp
from jax import lax
from jax.experimental import pallas as pl
from jax.experimental.pallas import tpu as pltpu


# ----------------------------------------------------------------------------
# Pallas kernel: per-mode complex channel contraction
#     out[b, o, m] = sum_i x[b, i, m] * w[i, o, m]        (complex, split R/I)
# ----------------------------------------------------------------------------
def _spectral_mul_kernel(x_ref, w_ref, o_ref, *, co_sub, m_sub, ci_unroll,
                         use_gauss):
    # x_ref : (1, 2, Ci, Mp)       [real, imag] Fourier modes of one batch
    # w_ref : (Ci, P, Co_t, Mp)    P=3 -> [wr, wr+wi, wi-wr]; P=2 -> [wr, wi]
    # o_ref : (1, 2, Co_t, Mp)     [real, imag] output tile (float32)
    ci = w_ref.shape[0]
    co_t = w_ref.shape[2]
    mp = w_ref.shape[3]

    # Walk the output in vreg-sized sub-tiles; reduce over Ci innermost with a
    # vreg-resident accumulator (no accumulator VMEM traffic in the hot loop).
    for co_off in range(0, co_t, co_sub):
        co_sl = pl.ds(co_off, co_sub)
        for m_off in range(0, mp, m_sub):
            m_sl = pl.ds(m_off, m_sub)

            def body(i, carry):
                acc_r, acc_i = carry
                xr = x_ref[0, 0, pl.ds(i, 1), m_sl].astype(jnp.float32)  # (1, m_sub)
                xi = x_ref[0, 1, pl.ds(i, 1), m_sl].astype(jnp.float32)
                wr = w_ref[i, 0, co_sl, m_sl].astype(jnp.float32)        # (co_sub, m_sub)
                if use_gauss:
                    ws = w_ref[i, 1, co_sl, m_sl].astype(jnp.float32)    # wr + wi
                    wd = w_ref[i, 2, co_sl, m_sl].astype(jnp.float32)    # wi - wr
                    k1 = wr * (xr + xi)                  # Gauss 3-multiply form
                    acc_r = acc_r + (k1 - xi * ws)
                    acc_i = acc_i + (k1 + xr * wd)
                else:
                    wim = w_ref[i, 1, co_sl, m_sl].astype(jnp.float32)
                    acc_r = acc_r + (xr * wr - xi * wim)
                    acc_i = acc_i + (xr * wim + xi * wr)
                return acc_r, acc_i

            zero = jnp.zeros((co_sub, m_sub), jnp.float32)
            acc_r, acc_i = lax.fori_loop(0, ci, body, (zero, zero),
                                         unroll=ci_unroll)
            o_ref[0, 0, co_sl, m_sl] = acc_r
            o_ref[0, 1, co_sl, m_sl] = acc_i


# ----------------------------------------------------------------------------
# Planning / packing (hoisted out of the per-call forward)
# ----------------------------------------------------------------------------
class SpectralPlan(NamedTuple):
    planes: int        # 3 = Gauss-packed weights, 2 = plain (wr, wi)
    co_tile: int       # output-channel tile per grid step
    w_buffers: int     # 1 = single-buffer the grid-invariant weights, 2 = default
    store_dtype: object  # dtype of the packed x / weight arrays fed to the kernel


def _round_up(n, m):
    return ((n + m - 1) // m) * m


def _vmem_capacity_bytes():
    try:
        return int(pltpu.get_tpu_info().vmem_capacity_bytes)
    except Exception:
        return 64 * 1024 * 1024          # conservative (v7x-sized) fallback


def _plan_tiling(ci, co, mp, itemsize):
    """VMEM-budget-driven choice of (weight planes, co_tile, weight buffers)."""
    budget = int(_vmem_capacity_bytes() * 0.55)   # headroom for compiler scratch

    def fits(planes, co_t, wbuf):
        w_bytes = ci * planes * co_t * mp * itemsize * wbuf
        x_bytes = 2 * ci * mp * itemsize * 2      # x block, double-buffered
        o_bytes = 2 * co_t * mp * 4 * 2           # f32 out block, double-buffered
        return w_bytes + x_bytes + o_bytes <= budget

    if co <= 64:
        co_cands = [co]
    else:
        co_cands = [t for t in (64, 32, 16, 8) if co % t == 0] or [co]

    # Preference order (per-generation guidance):
    #   (3, 2): Gauss weights, double-buffered  -- v5e/v6e (VALU-bound, VMEM ample)
    #   (3, 1): Gauss, single-buffered          -- weights are grid-invariant along
    #                                              the inner batch axis, so single
    #                                              buffering loses no overlap
    #   (2, 1): plain (wr, wi), single-buffered -- v7x / VMEM-tight: 33% smaller
    #                                              weight residency beats ~12% VALU
    for co_t in co_cands:
        for planes, wbuf in ((3, 2), (3, 1), (2, 1)):
            if fits(planes, co_t, wbuf):
                return planes, co_t, wbuf
    return 2, co_cands[-1], 1


def pack_spectral_weights(weights1, weights2, modes1, modes2, *, planes, mp,
                          dtype=jnp.float32):
    """Pack both mode blocks into (Ci, planes, Co, Mp) float planes.

    Depends only on the parameters: compute once per parameter update and reuse.
    """
    ci, co = weights1.shape[0], weights1.shape[1]
    m = modes1 * modes2
    wb = jnp.concatenate([weights1.reshape(ci, co, m),
                          weights2.reshape(ci, co, m)], axis=-1)   # (Ci, Co, 2M)
    wr = jnp.real(wb).astype(jnp.float32)
    wi = jnp.imag(wb).astype(jnp.float32)
    if planes == 3:     # grid-invariant Gauss combinations, hoisted out of the kernel
        wp = jnp.stack([wr, wr + wi, wi - wr], axis=1)
    else:               # plain 2-plane form (smaller VMEM/HBM residency)
        wp = jnp.stack([wr, wi], axis=1)
    wp = jnp.pad(wp, ((0, 0), (0, 0), (0, 0), (0, mp - 2 * m)))
    return wp.astype(dtype)


def prepare_spectral_conv2d(weights1, weights2, modes1, modes2, *,
                            store_dtype=jnp.float32, force_planes=None):
    """One-time (per parameter update) planning + weight packing."""
    ci, co = weights1.shape[0], weights1.shape[1]
    mp = _round_up(2 * modes1 * modes2, 128)     # fused, lane-dense mode axis
    itemsize = jnp.dtype(store_dtype).itemsize
    planes, co_tile, w_buffers = _plan_tiling(ci, co, mp, itemsize)
    if force_planes is not None:
        planes = force_planes
    plan = SpectralPlan(planes, co_tile, w_buffers, store_dtype)
    packed_w = pack_spectral_weights(weights1, weights2, modes1, modes2,
                                     planes=planes, mp=mp, dtype=store_dtype)
    return plan, packed_w


# ----------------------------------------------------------------------------
# pallas_call wrapper
# ----------------------------------------------------------------------------
def spectral_mul(x_packed, w_packed, *, co_tile, w_buffers):
    """out[b,{re,im},o,m] = sum_i x[b,i,m] * w[i,o,m]   (complex, split R/I).

    x_packed : (B, 2, Ci, Mp)            [real, imag]
    w_packed : (Ci, P, Co, Mp)           P=3 Gauss planes or P=2 (wr, wi)
    returns  : (B, 2, Co, Mp) float32
    """
    b, _, ci, mp = x_packed.shape
    planes, co = w_packed.shape[1], w_packed.shape[2]
    n_co = co // co_tile

    # In-kernel output sub-tiles: up to 8 sublanes x 128-512 lanes, so the
    # accumulator pair stays in vregs.
    co_sub = next(d for d in (8, 4, 2, 1) if co_tile % d == 0)
    m_sub = next(m for m in (512, 256, 128) if mp % m == 0)
    ci_unroll = 2 if co_sub * m_sub >= 4096 else 4     # bounded unroll, no spills

    kernel = functools.partial(
        _spectral_mul_kernel, co_sub=co_sub, m_sub=m_sub,
        ci_unroll=ci_unroll, use_gauss=(planes == 3))

    # Grid: (C_out tiles, batch) with batch INNERMOST -> the weight block index
    # is constant across consecutive grid steps, so the (large) weight operand
    # is DMA'd once per C_out tile, not once per batch element.
    x_spec = pl.BlockSpec((1, 2, ci, mp), lambda c, b_: (b_, 0, 0, 0))
    w_kwargs = {}
    if w_buffers == 1:
        # Weights only change on the outer (co) axis; single-buffering halves
        # their VMEM footprint with no pipelining loss.
        w_kwargs["pipeline_mode"] = pl.Buffered(1)
    w_spec = pl.BlockSpec((ci, planes, co_tile, mp),
                          lambda c, b_: (0, 0, c, 0), **w_kwargs)
    o_spec = pl.BlockSpec((1, 2, co_tile, mp), lambda c, b_: (b_, 0, c, 0))

    vmem_limit = min(int(_vmem_capacity_bytes() * 0.75), 100 * 1024 * 1024)

    return pl.pallas_call(
        kernel,
        out_shape=jax.ShapeDtypeStruct((b, 2, co, mp), jnp.float32),
        grid=(n_co, b),
        in_specs=[x_spec, w_spec],
        out_specs=o_spec,
        compiler_params=pltpu.CompilerParams(
            dimension_semantics=("parallel", "parallel"),
            vmem_limit_bytes=vmem_limit,
        ),
    )(x_packed, w_packed)


# ----------------------------------------------------------------------------
# Full forward pass (matches the PyTorch SpectralConv2d.forward)
# ----------------------------------------------------------------------------
def spectral_conv2d(x, weights1, weights2, modes1, modes2, *, prepared=None,
                    store_dtype=jnp.float32, force_planes=None):
    """x: (B, Ci, H, W) f32; weights: (Ci, Co, modes1, modes2) complex64.

    `prepared` is an optional (plan, packed_weights) pair from
    prepare_spectral_conv2d(); pass it to avoid re-packing weights per call.
    """
    b, ci, h, w = x.shape
    co = weights1.shape[1]
    wf = w // 2 + 1
    m = modes1 * modes2
    m2 = 2 * m
    mp = _round_up(m2, 128)

    if prepared is None:
        prepared = prepare_spectral_conv2d(
            weights1, weights2, modes1, modes2,
            store_dtype=store_dtype, force_planes=force_planes)
    plan, packed_w = prepared

    # TODO(synk): rfft2 / irfft2 have no Pallas/Mosaic primitive; they stay in XLA.
    x_ft = jnp.fft.rfft2(x)                               # (B, Ci, H, Wf) complex64

    # Gather + fuse the two mode blocks, split real/imag, pad lanes to Mp.
    low = x_ft[:, :, :modes1, :modes2].reshape(b, ci, m)
    high = x_ft[:, :, h - modes1:, :modes2].reshape(b, ci, m)
    xb = jnp.concatenate([low, high], axis=-1)            # (B, Ci, 2M)
    xp = jnp.stack([jnp.real(xb), jnp.imag(xb)], axis=1)  # (B, 2, Ci, 2M)
    xp = jnp.pad(xp, ((0, 0), (0, 0), (0, 0), (0, mp - m2)))
    xp = xp.astype(plan.store_dtype)

    out = spectral_mul(xp, packed_w, co_tile=plan.co_tile,
                       w_buffers=plan.w_buffers)          # (B, 2, Co, Mp) f32

    out_c = (out[:, 0, :, :m2] + 1j * out[:, 1, :, :m2]).astype(jnp.complex64)
    out_low = out_c[:, :, :m].reshape(b, co, modes1, modes2)
    out_high = out_c[:, :, m:].reshape(b, co, modes1, modes2)

    out_ft = jnp.zeros((b, co, h, wf), dtype=jnp.complex64)
    out_ft = out_ft.at[:, :, :modes1, :modes2].set(out_low)
    out_ft = out_ft.at[:, :, h - modes1:, :modes2].set(out_high)
    return jnp.fft.irfft2(out_ft, s=(h, w))


def _reference(x, w1, w2, modes1, modes2):
    """Pure-JAX reference matching the PyTorch forward."""
    b, ci, h, w = x.shape
    co = w1.shape[1]
    wf = w // 2 + 1
    x_ft = jnp.fft.rfft2(x)
    out_ft = jnp.zeros((b, co, h, wf), dtype=jnp.complex64)
    out_ft = out_ft.at[:, :, :modes1, :modes2].set(
        jnp.einsum('bixy,ioxy->boxy', x_ft[:, :, :modes1, :modes2], w1))
    out_ft = out_ft.at[:, :, h - modes1:, :modes2].set(
        jnp.einsum('bixy,ioxy->boxy', x_ft[:, :, h - modes1:, :modes2], w2))
    return jnp.fft.irfft2(out_ft, s=(h, w))


if __name__ == "__main__":
    # Module hyperparameters (small, consistent with the forward pass).
    B, C_in, C_out = 2, 4, 4
    H = W = 16
    modes1 = modes2 = 6              # modes2 <= W // 2 + 1 = 9

    key = jax.random.PRNGKey(0)
    kx, kw1r, kw1i, kw2r, kw2i = jax.random.split(key, 5)

    x = jax.random.normal(kx, (B, C_in, H, W), dtype=jnp.float32)

    # torch.rand(..., dtype=cfloat) => uniform [0, 1) real and imag parts, scaled.
    scale = 1.0 / (C_in * C_out)
    w_shape = (C_in, C_out, modes1, modes2)
    weights1 = (scale * (jax.random.uniform(kw1r, w_shape)
                         + 1j * jax.random.uniform(kw1i, w_shape))).astype(jnp.complex64)
    weights2 = (scale * (jax.random.uniform(kw2r, w_shape)
                         + 1j * jax.random.uniform(kw2i, w_shape))).astype(jnp.complex64)

    ref = jax.block_until_ready(_reference(x, weights1, weights2, modes1, modes2))

    # 1) Default path: plan + pack weights ONCE (hoisted out of the forward),
    #    then run the forward with the cached packing.
    prepared = prepare_spectral_conv2d(weights1, weights2, modes1, modes2)
    out = jax.block_until_ready(
        spectral_conv2d(x, weights1, weights2, modes1, modes2, prepared=prepared))
    assert out.shape == (B, C_out, H, W)
    assert jnp.max(jnp.abs(out - ref)) < 1e-4, "f32 Gauss path mismatch vs reference"

    # 2) Plain 2-plane (wr, wi) weight path -- the VMEM-tight / v7x fallback.
    out2 = jax.block_until_ready(
        spectral_conv2d(x, weights1, weights2, modes1, modes2, force_planes=2))
    assert jnp.max(jnp.abs(out2 - ref)) < 1e-4, "f32 2-plane path mismatch vs reference"

    # 3) bf16-stored x / weights (f32 accumulate, f32 output) -- the v6e/v7x
    #    production option; looser tolerance since inputs are rounded to bf16.
    out3 = jax.block_until_ready(
        spectral_conv2d(x, weights1, weights2, modes1, modes2,
                        store_dtype=jnp.bfloat16))
    assert jnp.max(jnp.abs(out3 - ref)) < 5e-2, "bf16 path mismatch vs reference"

    print("KERNEL_OK")
</pallas_src>

<mosaic_0001>
module attributes {stable_mosaic.version = 11 : i64} {
  func.func @_spectral_mul_kernel(%arg0: i32, %arg1: i32, %arg2: memref<1x2x4x128xf32, #tpu.memory_space<vmem>>, %arg3: memref<4x3x4x128xf32, #tpu.memory_space<vmem>>, %arg4: memref<1x2x4x128xf32, #tpu.memory_space<vmem>>) attributes {dimension_semantics = [#tpu.dimension_semantics<parallel>, #tpu.dimension_semantics<parallel>], iteration_bounds = array<i64: 1, 2>, scalar_prefetch = 0 : i64, scratch_operands = 0 : i64, tpu.core_type = #tpu.core_type<tc>, window_params = [{transform_indices = @transform_0, window_bounds = array<i64: 1, 2, 4, 128>}, {transform_indices = @transform_1, window_bounds = array<i64: 4, 3, 4, 128>}, {transform_indices = @transform_2, window_bounds = array<i64: 1, 2, 4, 128>}]} {
    %cst = arith.constant 0.000000e+00 : f32
    %0 = vector.broadcast %cst : f32 to vector<4x128xf32>
    %c0_i32 = arith.constant 0 : i32
    %c0 = arith.constant 0 : index
    %c0_0 = arith.constant 0 : index
    %1 = arith.index_cast %c0_i32 : i32 to index
    %c0_1 = arith.constant 0 : index
    %2 = vector.load %arg2[%c0, %c0_0, %1, %c0_1] : memref<1x2x4x128xf32, #tpu.memory_space<vmem>>, vector<1x1x1x128xf32>
    %3 = vector.shape_cast %2 : vector<1x1x1x128xf32> to vector<1x128xf32>
    %c0_2 = arith.constant 0 : index
    %c1 = arith.constant 1 : index
    %4 = arith.index_cast %c0_i32 : i32 to index
    %c0_3 = arith.constant 0 : index
    %5 = vector.load %arg2[%c0_2, %c1, %4, %c0_3] : memref<1x2x4x128xf32, #tpu.memory_space<vmem>>, vector<1x1x1x128xf32>
    %6 = vector.shape_cast %5 : vector<1x1x1x128xf32> to vector<1x128xf32>
    %7 = arith.index_cast %c0_i32 : i32 to index
    %c0_4 = arith.constant 0 : index
    %c0_5 = arith.constant 0 : index
    %c0_6 = arith.constant 0 : index
    %8 = vector.load %arg3[%7, %c0_4, %c0_5, %c0_6] : memref<4x3x4x128xf32, #tpu.memory_space<vmem>>, vector<1x1x4x128xf32>
    %9 = vector.shape_cast %8 : vector<1x1x4x128xf32> to vector<4x128xf32>
    %10 = arith.index_cast %c0_i32 : i32 to index
    %c1_7 = arith.constant 1 : index
    %c0_8 = arith.constant 0 : index
    %c0_9 = arith.constant 0 : index
    %11 = vector.load %arg3[%10, %c1_7, %c0_8, %c0_9] : memref<4x3x4x128xf32, #tpu.memory_space<vmem>>, vector<1x1x4x128xf32>
    %12 = vector.shape_cast %11 : vector<1x1x4x128xf32> to vector<4x128xf32>
    %13 = arith.index_cast %c0_i32 : i32 to index
    %c2 = arith.constant 2 : index
    %c0_10 = arith.constant 0 : index
    %c0_11 = arith.constant 0 : index
    %14 = vector.load %arg3[%13, %c2, %c0_10, %c0_11] : memref<4x3x4x128xf32, #tpu.memory_space<vmem>>, vector<1x1x4x128xf32>
    %15 = vector.shape_cast %14 : vector<1x1x4x128xf32> to vector<4x128xf32>
    %16 = arith.addf %3, %6 : vector<1x128xf32>
    %17 = vector.broadcast %16 : vector<1x128xf32> to vector<4x128xf32>
    %18 = arith.mulf %9, %17 : vector<4x128xf32>
    %19 = vector.broadcast %6 : vector<1x128xf32> to vector<4x128xf32>
    %20 = arith.mulf %19, %12 : vector<4x128xf32>
    %21 = arith.subf %18, %20 : vector<4x128xf32>
    %22 = arith.addf %0, %21 : vector<4x128xf32>
    %23 = vector.broadcast %3 : vector<1x128xf32> to vector<4x128xf32>
    %24 = arith.mulf %23, %15 : vector<4x128xf32>
    %25 = arith.addf %18, %24 : vector<4x128xf32>
    %26 = arith.addf %0, %25 : vector<4x128xf32>
    %c1_i32 = arith.constant 1 : i32
    %c0_12 = arith.constant 0 : index
    %c0_13 = arith.constant 0 : index
    %27 = arith.index_cast %c1_i32 : i32 to index
    %c0_14 = arith.constant 0 : index
    %28 = vector.load %arg2[%c0_12, %c0_13, %27, %c0_14] : memref<1x2x4x128xf32, #tpu.memory_space<vmem>>, vector<1x1x1x128xf32>
    %29 = vector.shape_cast %28 : vector<1x1x1x128xf32> to vector<1x128xf32>
    %c0_15 = arith.constant 0 : index
    %c1_16 = arith.constant 1 : index
    %30 = arith.index_cast %c1_i32 : i32 to index
    %c0_17 = arith.constant 0 : index
    %31 = vector.load %arg2[%c0_15, %c1_16, %30, %c0_17] : memref<1x2x4x128xf32, #tpu.memory_space<vmem>>, vector<1x1x1x128xf32>
    %32 = vector.shape_cast %31 : vector<1x1x1x128xf32> to vector<1x128xf32>
    %33 = arith.index_cast %c1_i32 : i32 to index
    %c0_18 = arith.constant 0 : index
    %c0_19 = arith.constant 0 : index
    %c0_20 = arith.constant 0 : index
    %34 = vector.load %arg3[%33, %c0_18, %c0_19, %c0_20] : memref<4x3x4x128xf32, #tpu.memory_space<vmem>>, vector<1x1x4x128xf32>
    %35 = vector.shape_cast %34 : vector<1x1x4x128xf32> to vector<4x128xf32>
    %36 = arith.index_cast %c1_i32 : i32 to index
    %c1_21 = arith.constant 1 : index
    %c0_22 = arith.constant 0 : index
    %c0_23 = arith.constant 0 : index
    %37 = vector.load %arg3[%36, %c1_21, %c0_22, %c0_23] : memref<4x3x4x128xf32, #tpu.memory_space<vmem>>, vector<1x1x4x128xf32>
    %38 = vector.shape_cast %37 : vector<1x1x4x128xf32> to vector<4x128xf32>
    %39 = arith.index_cast %c1_i32 : i32 to index
    %c2_24 = arith.constant 2 : index
    %c0_25 = arith.constant 0 : index
    %c0_26 = arith.constant 0 : index
    %40 = vector.load %arg3[%39, %c2_24, %c0_25, %c0_26] : memref<4x3x4x128xf32, #tpu.memory_space<vmem>>, vector<1x1x4x128xf32>
    %41 = vector.shape_cast %40 : vector<1x1x4x128xf32> to vector<4x128xf32>
    %42 = arith.addf %29, %32 : vector<1x128xf32>
    %43 = vector.broadcast %42 : vector<1x128xf32> to vector<4x128xf32>
    %44 = arith.mulf %35, %43 : vector<4x128xf32>
    %45 = vector.broadcast %32 : vector<1x128xf32> to vector<4x128xf32>
    %46 = arith.mulf %45, %38 : vector<4x128xf32>
    %47 = arith.subf %44, %46 : vector<4x128xf32>
    %48 = arith.addf %22, %47 : vector<4x128xf32>
    %49 = vector.broadcast %29 : vector<1x128xf32> to vector<4x128xf32>
    %50 = arith.mulf %49, %41 : vector<4x128xf32>
    %51 = arith.addf %44, %50 : vector<4x128xf32>
    %52 = arith.addf %26, %51 : vector<4x128xf32>
    %c2_i32 = arith.constant 2 : i32
    %c0_27 = arith.constant 0 : index
    %c0_28 = arith.constant 0 : index
    %53 = arith.index_cast %c2_i32 : i32 to index
    %c0_29 = arith.constant 0 : index
    %54 = vector.load %arg2[%c0_27, %c0_28, %53, %c0_29] : memref<1x2x4x128xf32, #tpu.memory_space<vmem>>, vector<1x1x1x128xf32>
    %55 = vector.shape_cast %54 : vector<1x1x1x128xf32> to vector<1x128xf32>
    %c0_30 = arith.constant 0 : index
    %c1_31 = arith.constant 1 : index
    %56 = arith.index_cast %c2_i32 : i32 to index
    %c0_32 = arith.constant 0 : index
    %57 = vector.load %arg2[%c0_30, %c1_31, %56, %c0_32] : memref<1x2x4x128xf32, #tpu.memory_space<vmem>>, vector<1x1x1x128xf32>
    %58 = vector.shape_cast %57 : vector<1x1x1x128xf32> to vector<1x128xf32>
    %59 = arith.index_cast %c2_i32 : i32 to index
    %c0_33 = arith.constant 0 : index
    %c0_34 = arith.constant 0 : index
    %c0_35 = arith.constant 0 : index
    %60 = vector.load %arg3[%59, %c0_33, %c0_34, %c0_35] : memref<4x3x4x128xf32, #tpu.memory_space<vmem>>, vector<1x1x4x128xf32>
    %61 = vector.shape_cast %60 : vector<1x1x4x128xf32> to vector<4x128xf32>
    %62 = arith.index_cast %c2_i32 : i32 to index
    %c1_36 = arith.constant 1 : index
    %c0_37 = arith.constant 0 : index
    %c0_38 = arith.constant 0 : index
    %63 = vector.load %arg3[%62, %c1_36, %c0_37, %c0_38] : memref<4x3x4x128xf32, #tpu.memory_space<vmem>>, vector<1x1x4x128xf32>
    %64 = vector.shape_cast %63 : vector<1x1x4x128xf32> to vector<4x128xf32>
    %65 = arith.index_cast %c2_i32 : i32 to index
    %c2_39 = arith.constant 2 : index
    %c0_40 = arith.constant 0 : index
    %c0_41 = arith.constant 0 : index
    %66 = vector.load %arg3[%65, %c2_39, %c0_40, %c0_41] : memref<4x3x4x128xf32, #tpu.memory_space<vmem>>, vector<1x1x4x128xf32>
    %67 = vector.shape_cast %66 : vector<1x1x4x128xf32> to vector<4x128xf32>
    %68 = arith.addf %55, %58 : vector<1x128xf32>
    %69 = vector.broadcast %68 : vector<1x128xf32> to vector<4x128xf32>
    %70 = arith.mulf %61, %69 : vector<4x128xf32>
    %71 = vector.broadcast %58 : vector<1x128xf32> to vector<4x128xf32>
    %72 = arith.mulf %71, %64 : vector<4x128xf32>
    %73 = arith.subf %70, %72 : vector<4x128xf32>
    %74 = arith.addf %48, %73 : vector<4x128xf32>
    %75 = vector.broadcast %55 : vector<1x128xf32> to vector<4x128xf32>
    %76 = arith.mulf %75, %67 : vector<4x128xf32>
    %77 = arith.addf %70, %76 : vector<4x128xf32>
    %78 = arith.addf %52, %77 : vector<4x128xf32>
    %c3_i32 = arith.constant 3 : i32
    %c0_42 = arith.constant 0 : index
    %c0_43 = arith.constant 0 : index
    %79 = arith.index_cast %c3_i32 : i32 to index
    %c0_44 = arith.constant 0 : index
    %80 = vector.load %arg2[%c0_42, %c0_43, %79, %c0_44] : memref<1x2x4x128xf32, #tpu.memory_space<vmem>>, vector<1x1x1x128xf32>
    %81 = vector.shape_cast %80 : vector<1x1x1x128xf32> to vector<1x128xf32>
    %c0_45 = arith.constant 0 : index
    %c1_46 = arith.constant 1 : index
    %82 = arith.index_cast %c3_i32 : i32 to index
    %c0_47 = arith.constant 0 : index
    %83 = vector.load %arg2[%c0_45, %c1_46, %82, %c0_47] : memref<1x2x4x128xf32, #tpu.memory_space<vmem>>, vector<1x1x1x128xf32>
    %84 = vector.shape_cast %83 : vector<1x1x1x128xf32> to vector<1x128xf32>
    %85 = arith.index_cast %c3_i32 : i32 to index
    %c0_48 = arith.constant 0 : index
    %c0_49 = arith.constant 0 : index
    %c0_50 = arith.constant 0 : index
    %86 = vector.load %arg3[%85, %c0_48, %c0_49, %c0_50] : memref<4x3x4x128xf32, #tpu.memory_space<vmem>>, vector<1x1x4x128xf32>
    %87 = vector.shape_cast %86 : vector<1x1x4x128xf32> to vector<4x128xf32>
    %88 = arith.index_cast %c3_i32 : i32 to index
    %c1_51 = arith.constant 1 : index
    %c0_52 = arith.constant 0 : index
    %c0_53 = arith.constant 0 : index
    %89 = vector.load %arg3[%88, %c1_51, %c0_52, %c0_53] : memref<4x3x4x128xf32, #tpu.memory_space<vmem>>, vector<1x1x4x128xf32>
    %90 = vector.shape_cast %89 : vector<1x1x4x128xf32> to vector<4x128xf32>
    %91 = arith.index_cast %c3_i32 : i32 to index
    %c2_54 = arith.constant 2 : index
    %c0_55 = arith.constant 0 : index
    %c0_56 = arith.constant 0 : index
    %92 = vector.load %arg3[%91, %c2_54, %c0_55, %c0_56] : memref<4x3x4x128xf32, #tpu.memory_space<vmem>>, vector<1x1x4x128xf32>
    %93 = vector.shape_cast %92 : vector<1x1x4x128xf32> to vector<4x128xf32>
    %94 = arith.addf %81, %84 : vector<1x128xf32>
    %95 = vector.broadcast %94 : vector<1x128xf32> to vector<4x128xf32>
    %96 = arith.mulf %87, %95 : vector<4x128xf32>
    %97 = vector.broadcast %84 : vector<1x128xf32> to vector<4x128xf32>
    %98 = arith.mulf %97, %90 : vector<4x128xf32>
    %99 = arith.subf %96, %98 : vector<4x128xf32>
    %100 = arith.addf %74, %99 : vector<4x128xf32>
    %101 = vector.broadcast %81 : vector<1x128xf32> to vector<4x128xf32>
    %102 = arith.mulf %101, %93 : vector<4x128xf32>
    %103 = arith.addf %96, %102 : vector<4x128xf32>
    %104 = arith.addf %78, %103 : vector<4x128xf32>
    %c4_i32 = arith.constant 4 : i32
    %c0_57 = arith.constant 0 : index
    %c0_58 = arith.constant 0 : index
    %c0_59 = arith.constant 0 : index
    %c0_60 = arith.constant 0 : index
    %105 = vector.load %arg4[%c0_57, %c0_58, %c0_59, %c0_60] : memref<1x2x4x128xf32, #tpu.memory_space<vmem>>, vector<1x1x4x128xf32>
    %106 = vector.shape_cast %105 : vector<1x1x4x128xf32> to vector<4x128xf32>
    %107 = vector.shape_cast %100 : vector<4x128xf32> to vector<1x1x4x128xf32>
    tpu.vector_store %arg4[%c0_57, %c0_58, %c0_59, %c0_60], %107 {strides = array<i32>} : memref<1x2x4x128xf32, #tpu.memory_space<vmem>>, vector<1x1x4x128xf32>,
    %c0_61 = arith.constant 0 : index
    %c1_62 = arith.constant 1 : index
    %c0_63 = arith.constant 0 : index
    %c0_64 = arith.constant 0 : index
    %108 = vector.load %arg4[%c0_61, %c1_62, %c0_63, %c0_64] : memref<1x2x4x128xf32, #tpu.memory_space<vmem>>, vector<1x1x4x128xf32>
    %109 = vector.shape_cast %108 : vector<1x1x4x128xf32> to vector<4x128xf32>
    %110 = vector.shape_cast %104 : vector<4x128xf32> to vector<1x1x4x128xf32>
    tpu.vector_store %arg4[%c0_61, %c1_62, %c0_63, %c0_64], %110 {strides = array<i32>} : memref<1x2x4x128xf32, #tpu.memory_space<vmem>>, vector<1x1x4x128xf32>,
    return
  }
  func.func @transform_0(%arg0: i32, %arg1: i32) -> (i32, i32, i32, i32) {
    %c0_i32 = arith.constant 0 : i32
    %c0_i32_0 = arith.constant 0 : i32
    %c0_i32_1 = arith.constant 0 : i32
    %c0_i32_2 = arith.constant 0 : i32
    return %arg1, %c0_i32, %c0_i32_0, %c0_i32_1 : i32, i32, i32, i32
  }
  func.func @transform_1(%arg0: i32, %arg1: i32) -> (i32, i32, i32, i32) {
    %c0_i32 = arith.constant 0 : i32
    %c0_i32_0 = arith.constant 0 : i32
    %c0_i32_1 = arith.constant 0 : i32
    %c0_i32_2 = arith.constant 0 : i32
    return %c0_i32, %c0_i32_0, %arg0, %c0_i32_1 : i32, i32, i32, i32
  }
  func.func @transform_2(%arg0: i32, %arg1: i32) -> (i32, i32, i32, i32) {
    %c0_i32 = arith.constant 0 : i32
    %c0_i32_0 = arith.constant 0 : i32
    %c0_i32_1 = arith.constant 0 : i32
    return %arg1, %c0_i32, %arg0, %c0_i32_0 : i32, i32, i32, i32
  }
}

</mosaic_0001>

<llo_original>
// kernel: tpu_custom_call.1
$region0: #{tpu_custom_call.1}
  #allocation0 [shape = 'u32[]', space=smem, size = 0x4, offset = 0x4, fixed_abs, tag = 'smem constant byte address 0x4 - core index']
  #allocation1 [shape = 'u32[72,128]{1,0:T(1,128)}', space=vmem, size = 0x9000, scoped, tag = 'internal scratch']
  %s0 = inlined_call_operand.hbm [shape: f32[2,2,4,128], index: 0, kind: input, shape index: {}]
  %s1 = inlined_call_operand.hbm [shape: f32[4,3,4,128], index: 1, kind: input, shape index: {}]
  %s2 = inlined_call_operand.hbm [shape: f32[2,2,4,128], index: 2, kind: output, shape index: {}]
  %s3 = sld [smem:[#allocation0]]
  $region49: #{tpu_custom_call.1} parent=0
    _
  %s5 = ssub.s32 1, %s3
  %s6 = scalar_select 0, %s5, %s3
  $region1: #{tpu_custom_call.1} parent=0
    #allocation2 [shape = 'u8[8192]{0}', space=vmem, size = 0x2000, scoped, tag = 'input window, operand 0']
    #allocation3 [shape = 's32[2]{0}', space=sflag, size = 0x8, scoped, tag = 'scoped memory for tpu_custom_call.1']
    #allocation4 [shape = 's32[2]{0}', space=sflag, size = 0x8, scoped, tag = 'scoped memory for tpu_custom_call.1']
    #allocation5 [shape = 'u8[24576]{0}', space=vmem, size = 0x6000, scoped, tag = 'input window, operand 1, single buffered']
    #allocation6 [shape = 's32[1]{0}', space=sflag, size = 0x4, scoped, tag = 'scoped memory for tpu_custom_call.1']
    #allocation7 [shape = 'u8[8192]{0}', space=vmem, size = 0x2000, scoped, tag = 'output window, operand 0']
    %7 = vsyncpa [#allocation3], 0
    %s8 = scalar_lea.sflag [#allocation3], 1
    %9 = vsyncpa %s8, 0
    %10 = vsyncpa [#allocation6], 0
    %11 = vsyncpa [#allocation4], 0
    %s12 = scalar_lea.sflag [#allocation4], 1
    %13 = vsyncpa %s12, 0
    loop: start=0, step=1, limit=4
    $region2: #{tpu_custom_call.1} parent=1 // loop_pre_header
      _
    $region3: #{tpu_custom_call.1} parent=1 // loop_header
      %s15 = sphi 0, %s19
      %p16 = scmp.ge.s32.totalorder %s15, 4
      %s22 = sphi 0, %s34
      %s23 = sphi 0, %s30
      %s24 = sphi 0, %s22
      %s25 = sphi 0, %s23
      %s26 = sphi 0, %s24
      %s27 = sphi 0, %s25
      %s37 = sphi 0, %s39
      %s40 = sphi 0, %s37
      %s41 = sphi 0, %s40
      %s57 = sphi 0, %s41
      %s63 = sphi 0, %s65
      %s66 = sphi 0, %s63
      %s67 = sphi 0, %s66
      %s83 = sphi 0, %s67
      %s91 = sphi 0, %s93
      %s94 = sphi 0, %s91
      %s95 = sphi 0, %s94
      %s111 = sphi 0, %s95
    $region4: #{tpu_custom_call.1} parent=1 // loop_header_branch
      %18 = sbr.rel (%p16) target = $region8
    $region5: #{tpu_custom_call.1} parent=1 // loop_body
      %s20 = ssub.s32 %s15, 1
      %s21 = ssub.s32 %s15, 2
      %s28 = sadd.s32 1, %s23
      %p29 = scmp.ge.s32.totalorder %s28, 2
      %s30 = scalar_select %p29, 0, %s28
      %s31 = sadd.s32 1, %s22
      %s32 = scalar_select %p29, %s31, %s22
      %p33 = scmp.ge.s32.totalorder %s32, 1
      %s34 = scalar_select %p33, 0, %s32
      %s35 = ssub.s32 %s23, %s30
      %p36 = scmp.eq.s32.totalorder %s35, 0
      %s38 = sadd.s32 %s37, 1
      %s39 = scalar_select %p36, %s37, %s38
      %p42 = pneg %p36
      %p43 = scmp.eq.s32.totalorder %s15, 1
      %p44 = por %p42, %p43
      %p45 = scmp.ne.s32.totalorder %s37, %s40
      %p46 = scmp.eq.s32.totalorder %s15, 0
      %p47 = por %p45, %p46
      %p48 = scmp.ne.s32.totalorder %s37, %s40
      %p49 = scmp.eq.s32.totalorder %s20, 1
      %p50 = por %p48, %p49
      %p51 = scmp.ne.s32.totalorder %s40, %s41
      %p52 = scmp.eq.s32.totalorder %s20, 0
      %p53 = por %p51, %p52
      %p54 = scmp.ne.s32.totalorder %s40, %s41
      %p55 = scmp.eq.s32.totalorder %s21, 1
      %p56 = por %p54, %p55
      %p58 = scmp.ne.s32.totalorder %s41, %s57
      %p59 = scmp.eq.s32.totalorder %s21, 0
      %p60 = por %p58, %p59
      %s61 = ssub.s32 %s22, %s34
      %p62 = scmp.eq.s32.totalorder %s61, 0
      %s64 = sadd.s32 %s63, 1
      %s65 = scalar_select %p62, %s63, %s64
      %p68 = pneg %p62
      %p69 = scmp.eq.s32.totalorder %s15, 1
      %p70 = por %p68, %p69
      %p71 = scmp.ne.s32.totalorder %s63, %s66
      %p72 = scmp.eq.s32.totalorder %s15, 0
      %p73 = por %p71, %p72
      %p74 = scmp.ne.s32.totalorder %s63, %s66
      %p75 = scmp.eq.s32.totalorder %s20, 1
      %p76 = por %p74, %p75
      %p77 = scmp.ne.s32.totalorder %s66, %s67
      %p78 = scmp.eq.s32.totalorder %s20, 0
      %p79 = por %p77, %p78
      %p80 = scmp.ne.s32.totalorder %s66, %s67
      %p81 = scmp.eq.s32.totalorder %s21, 1
      %p82 = por %p80, %p81
      %p84 = scmp.ne.s32.totalorder %s67, %s83
      %p85 = scmp.eq.s32.totalorder %s21, 0
      %p86 = por %p84, %p85
      %s87 = ssub.s32 %s23, %s30
      %s88 = ssub.s32 %s22, %s34
      %s89 = sor.u32 %s87, %s88
      %p90 = scmp.eq.s32.totalorder %s89, 0
      %s92 = sadd.s32 %s91, 1
      %s93 = scalar_select %p90, %s91, %s92
      %p96 = pneg %p90
      %p97 = scmp.eq.s32.totalorder %s15, 1
      %p98 = por %p96, %p97
      %p99 = scmp.ne.s32.totalorder %s91, %s94
      %p100 = scmp.eq.s32.totalorder %s15, 0
      %p101 = por %p99, %p100
      %p102 = scmp.ne.s32.totalorder %s91, %s94
      %p103 = scmp.eq.s32.totalorder %s20, 1
      %p104 = por %p102, %p103
      %p105 = scmp.ne.s32.totalorder %s94, %s95
      %p106 = scmp.eq.s32.totalorder %s20, 0
      %p107 = por %p105, %p106
      %p108 = scmp.ne.s32.totalorder %s94, %s95
      %p109 = scmp.eq.s32.totalorder %s21, 1
      %p110 = por %p108, %p109
      %p112 = scmp.ne.s32.totalorder %s95, %s111
      %p113 = scmp.eq.s32.totalorder %s21, 0
      %p114 = por %p112, %p113
      %p115 = scmp.le.s32.totalorder 1, %s15
      %p116 = scmp.lt.s32.totalorder %s15, 3
      %p117 = pnand %p115, %p116
      %p118 = pneg %p117
      // Predicated region
      $region9: #{tpu_custom_call.1} parent=5 // pred_check
        _
      $region10: #{tpu_custom_call.1} parent=5 // pred_check_branch
        %120 = sbr.rel (%p117) target = $region12
      $region11: #{tpu_custom_call.1} parent=5 // pred_region
        %s121 = ssub.s32 %s15, 1
        // Predicated region
        $region13: #{tpu_custom_call.1} parent=11 // pred_check
          %p122 = pneg %p79
        $region14: #{tpu_custom_call.1} parent=11 // pred_check_branch
          %124 = sbr.rel (%p122) target = $region16
        $region15: #{tpu_custom_call.1} parent=11 // pred_region
          %126 = vsyncadd [#allocation6], 0
          %s127 = smul.addr %s24, 4
          %s128 = scalar_lea.hbm %s1, %s127
          %s129 = sshll.u32 %s128, 4
          %s130 = int_to_ptr.hbm [resolvable:$true] %s129
          %s131 = sshll.u32 [#allocation5], 4
          %s132 = int_to_ptr.vmem [resolvable:$true] %s131
          %137 = dma.hbm_to_vmem [thread:$0]  %s130, 768, %s132, [#allocation6], 64, 64, 4
        $region16: #{tpu_custom_call.1} parent=11 // pred_fallthru
          _
      $region12: #{tpu_custom_call.1} parent=5 // pred_fallthru
        _
      %p138 = scmp.lt.s32.totalorder %s15, 2
      // Predicated region
      $region17: #{tpu_custom_call.1} parent=5 // pred_check
        %p139 = pneg %p138
      $region18: #{tpu_custom_call.1} parent=5 // pred_check_branch
        %141 = sbr.rel (%p139) target = $region20
      $region19: #{tpu_custom_call.1} parent=5 // pred_region
        // Predicated region
        $region21: #{tpu_custom_call.1} parent=19 // pred_check
          %p142 = pneg %p47
        $region22: #{tpu_custom_call.1} parent=19 // pred_check_branch
          %144 = sbr.rel (%p142) target = $region24
        $region23: #{tpu_custom_call.1} parent=19 // pred_region
          %s145 = sand.u32 %s37, 1
          %s146 = scalar_lea.sflag [#allocation3], %s145
          %s147 = sand.u32 %s37, 1
          %s148 = smul.addr %s147, 8
          %s149 = scalar_lea.vmem [#allocation2], %s148
          %151 = vsyncadd %s146, 0
          %s152 = smul.addr %s23, 2
          %s153 = smul.addr %s152, 4
          %s154 = scalar_lea.hbm %s0, %s153
          %s155 = sshll.u32 %s154, 4
          %s156 = int_to_ptr.hbm [resolvable:$true] %s155
          %s157 = sshll.u32 %s149, 4
          %s158 = int_to_ptr.vmem [resolvable:$true] %s157
          %163 = dma.hbm_to_vmem [thread:$0]  %s156, 128, %s158, %s146, 64, 64, 4
        $region24: #{tpu_custom_call.1} parent=19 // pred_fallthru
          _
      $region20: #{tpu_custom_call.1} parent=5 // pred_fallthru
        _
      %p164 = scmp.le.s32.totalorder 1, %s15
      %p165 = scmp.lt.s32.totalorder %s15, 3
      %p166 = pnand %p164, %p165
      %p167 = pneg %p166
      // Predicated region
      $region25: #{tpu_custom_call.1} parent=5 // pred_check
        _
      $region26: #{tpu_custom_call.1} parent=5 // pred_check_branch
        %169 = sbr.rel (%p166) target = $region28
      $region27: #{tpu_custom_call.1} parent=5 // pred_region
        %s170 = ssub.s32 %s15, 1
        %s171 = sand.u32 %s40, 1
        %s172 = scalar_lea.sflag [#allocation3], %s171
        %s173 = sand.u32 %s40, 1
        %s174 = smul.addr %s173, 8
        %s175 = scalar_lea.vmem [#allocation2], %s174
        // Predicated region
        $region29: #{tpu_custom_call.1} parent=27 // pred_check
          %p176 = pneg %p53
        $region30: #{tpu_custom_call.1} parent=27 // pred_check_branch
          %178 = sbr.rel (%p176) target = $region32
        $region31: #{tpu_custom_call.1} parent=27 // pred_region
          %180 = dma.done %s172, 128
        $region32: #{tpu_custom_call.1} parent=27 // pred_fallthru
          _
        // Predicated region
        $region33: #{tpu_custom_call.1} parent=27 // pred_check
          %p181 = pneg %p79
        $region34: #{tpu_custom_call.1} parent=27 // pred_check_branch
          %183 = sbr.rel (%p181) target = $region36
        $region35: #{tpu_custom_call.1} parent=27 // pred_region
          %185 = dma.done [#allocation6], 768
        $region36: #{tpu_custom_call.1} parent=27 // pred_fallthru
          _
        %s186 = sand.u32 %s40, 1
        %s187 = scalar_lea.sflag [#allocation3], %s186
        %s188 = sand.u32 %s40, 1
        %s189 = smul.addr %s188, 8
        %s190 = scalar_lea.vmem [#allocation2], %s189
        %p191 = pneg %p53
        %p192 = pneg %p50
        %p193 = pneg %p79
        %p194 = pneg %p76
        %p195 = pneg %p107
        %p196 = pneg %p104
        %s197 = sand.u32 %s94, 1
        %s198 = scalar_lea.sflag [#allocation4], %s197
        %s199 = sand.u32 %s94, 1
        %s200 = smul.addr %s199, 8
        %s201 = scalar_lea.vmem [#allocation7], %s200
        %v202 = vld [vmem:[%s175] sm:$0x1]
        %s203 = scalar_lea.vmem %s175, 4 [#allocation2]
        %v204 = vld [vmem:[%s203] sm:$0x1]
        %v205 = vld [vmem:[#allocation5] sm:$0xf]
        %s206 = scalar_lea.vmem [#allocation5], 4
        %v207 = vld [vmem:[%s206] sm:$0xf]
        %s208 = scalar_lea.vmem [#allocation5], 8
        %v209 = vld [vmem:[%s208] sm:$0xf]
        %v210 = vadd.f32 %v202, %v204
        %v211 = vperm.slane %v210, 0
        %v212 = vmul.f32 %v205, %v211
        %v213 = vperm.slane %v204, 0
        %v214 = vmul.f32 %v213, %v207
        %v215 = vsub.f32 %v212, %v214
        %v216 = vadd.f32 %v215, 0.0
        %v217 = vperm.slane %v202, 0
        %v218 = vmul.f32 %v217, %v209
        %v219 = vadd.f32 %v212, %v218
        %v220 = vadd.f32 %v219, 0.0
        %v221 = vld [vmem:[%s175 + $0x1] sm:$0x1]
        %v222 = vld [vmem:[%s203 + $0x1] sm:$0x1]
        %s223 = scalar_lea.vmem [#allocation5], 12
        %v224 = vld [vmem:[%s223] sm:$0xf]
        %s225 = scalar_lea.vmem [#allocation5], 16
        %v226 = vld [vmem:[%s225] sm:$0xf]
        %s227 = scalar_lea.vmem [#allocation5], 20
        %v228 = vld [vmem:[%s227] sm:$0xf]
        %v229 = vadd.f32 %v221, %v222
        %v230 = vperm.slane %v229, 0
        %v231 = vmul.f32 %v224, %v230
        %v232 = vperm.slane %v222, 0
        %v233 = vmul.f32 %v232, %v226
        %v234 = vsub.f32 %v231, %v233
        %v235 = vadd.f32 %v216, %v234
        %v236 = vperm.slane %v221, 0
        %v237 = vmul.f32 %v236, %v228
        %v238 = vadd.f32 %v231, %v237
        %v239 = vadd.f32 %v220, %v238
        %v240 = vld [vmem:[%s175 + $0x2] sm:$0x1]
        %v241 = vld [vmem:[%s203 + $0x2] sm:$0x1]
        %s242 = scalar_lea.vmem [#allocation5], 24
        %v243 = vld [vmem:[%s242] sm:$0xf]
        %s244 = scalar_lea.vmem [#allocation5], 28
        %v245 = vld [vmem:[%s244] sm:$0xf]
        %s246 = scalar_lea.vmem [#allocation5], 32
        %v247 = vld [vmem:[%s246] sm:$0xf]
        %v248 = vadd.f32 %v240, %v241
        %v249 = vperm.slane %v248, 0
        %v250 = vmul.f32 %v243, %v249
        %v251 = vperm.slane %v241, 0
        %v252 = vmul.f32 %v251, %v245
        %v253 = vsub.f32 %v250, %v252
        %v254 = vadd.f32 %v235, %v253
        %v255 = vperm.slane %v240, 0
        %v256 = vmul.f32 %v255, %v247
        %v257 = vadd.f32 %v250, %v256
        %v258 = vadd.f32 %v239, %v257
        %v259 = vld [vmem:[%s175 + $0x3] sm:$0x1]
        %v260 = vld [vmem:[%s203 + $0x3] sm:$0x1]
        %s261 = scalar_lea.vmem [#allocation5], 36
        %v262 = vld [vmem:[%s261] sm:$0xf]
        %s263 = scalar_lea.vmem [#allocation5], 40
        %v264 = vld [vmem:[%s263] sm:$0xf]
        %s265 = scalar_lea.vmem [#allocation5], 44
        %v266 = vld [vmem:[%s265] sm:$0xf]
        %v267 = vadd.f32 %v259, %v260
        %v268 = vperm.slane %v267, 0
        %v269 = vmul.f32 %v262, %v268
        %v270 = vperm.slane %v260, 0
        %v271 = vmul.f32 %v270, %v264
        %v272 = vsub.f32 %v269, %v271
        %v273 = vadd.f32 %v254, %v272
        %v274 = vperm.slane %v259, 0
        %v275 = vmul.f32 %v274, %v266
        %v276 = vadd.f32 %v269, %v275
        %v277 = vadd.f32 %v258, %v276
        %278 = vst [vmem:[%s201] sm:$0xf] %v273
        %s279 = scalar_lea.vmem %s201, 4 [#allocation7]
        %280 = vst [vmem:[%s279] sm:$0xf] %v277
        %s281 = sand.u32 %s94, 1
        %s282 = scalar_lea.sflag [#allocation4], %s281
        %s283 = sand.u32 %s94, 1
        %s284 = smul.addr %s283, 8
        %s285 = scalar_lea.vmem [#allocation7], %s284
        // Predicated region
        $region37: #{tpu_custom_call.1} parent=27 // pred_check
          %p286 = pneg %p104
        $region38: #{tpu_custom_call.1} parent=27 // pred_check_branch
          %288 = sbr.rel (%p286) target = $region40
        $region39: #{tpu_custom_call.1} parent=27 // pred_region
          %290 = vsyncadd %s282, 0
          %s291 = smul.addr %s25, 2
          %s292 = sadd.s32 %s24, %s291
          %s293 = smul.addr %s292, 4
          %s294 = scalar_lea.hbm %s2, %s293
          %s295 = sshll.u32 %s285, 4
          %s296 = int_to_ptr.vmem [resolvable:$true] %s295
          %s297 = sshll.u32 %s294, 4
          %s298 = int_to_ptr.hbm [resolvable:$true] %s297
          %303 = dma.vmem_to_hbm [thread:$0]  %s296, 128, %s298, %s282, 64, 64, 4
        $region40: #{tpu_custom_call.1} parent=27 // pred_fallthru
          _
      $region28: #{tpu_custom_call.1} parent=5 // pred_fallthru
        _
      %p304 = scmp.le.s32.totalorder 2, %s15
      // Predicated region
      $region41: #{tpu_custom_call.1} parent=5 // pred_check
        %p305 = pneg %p304
      $region42: #{tpu_custom_call.1} parent=5 // pred_check_branch
        %307 = sbr.rel (%p305) target = $region44
      $region43: #{tpu_custom_call.1} parent=5 // pred_region
        %s308 = ssub.s32 %s15, 2
        // Predicated region
        $region45: #{tpu_custom_call.1} parent=43 // pred_check
          %p309 = pneg %p110
        $region46: #{tpu_custom_call.1} parent=43 // pred_check_branch
          %311 = sbr.rel (%p309) target = $region48
        $region47: #{tpu_custom_call.1} parent=43 // pred_region
          %s312 = sand.u32 %s95, 1
          %s313 = scalar_lea.sflag [#allocation4], %s312
          %s314 = sand.u32 %s95, 1
          %s315 = smul.addr %s314, 8
          %s316 = scalar_lea.vmem [#allocation7], %s315
          %318 = dma.done %s313, 128
        $region48: #{tpu_custom_call.1} parent=43 // pred_fallthru
          _
      $region44: #{tpu_custom_call.1} parent=5 // pred_fallthru
        _
    $region6: #{tpu_custom_call.1} parent=1 // loop_footer
      %s19 = sadd.s32 1, %s15
    $region7: #{tpu_custom_call.1} parent=1 // loop_footer_branch
      %14 = sbr.rel target = $region3
    $region8: #{tpu_custom_call.1} parent=1 // loop_exit
      _
    %319 = vsyncpa [#allocation3], 1
    %s320 = scalar_lea.sflag [#allocation3], 1
    %321 = vsyncpa %s320, 1
    %322 = vsyncpa [#allocation6], 1
    %323 = vsyncpa [#allocation4], 1
    %s324 = scalar_lea.sflag [#allocation4], 1
    %325 = vsyncpa %s324, 1

</llo_original>
